<compile_context>
chip_gen: v7x
topology: tpu7x:2x2x1
jax: 0.10.0
libtpu: 0.0.40
codegen_flags: <defaults>
</compile_context>

<pallas_src>
import functools

import jax
import jax.numpy as jnp
from jax.experimental import pallas as pl
from jax.experimental.pallas import tpu as pltpu


def _round_up(n, m):
    return ((n + m - 1) // m) * m


def _rope_kernel(inv_ref, pos_ref, cos_ref, sin_ref, *, half_trig):
    """One row-tile of the RoPE cos/sin table.

    inv_ref: (1, dim) [full path] or (1, dim//2) [half path], float32.
    pos_ref: (TS, 1) float32 positions for this block.
    cos_ref / sin_ref: (TS, dim) in the output dtype.
    """
    if half_trig:
        half = inv_ref.shape[-1]
        freqs = pos_ref[...] * inv_ref[...]                 # (TS, half)
        c = jnp.cos(freqs).astype(cos_ref.dtype)
        s = jnp.sin(freqs).astype(sin_ref.dtype)
        # Two lane-dense slice stores (half % 128 == 0) instead of a
        # lane-concatenate + full-width f32 temp.
        cos_ref[:, :half] = c
        cos_ref[:, half:] = c
        sin_ref[:, :half] = s
        sin_ref[:, half:] = s
    else:
        # inv_ref already holds the duplicated [inv_freq, inv_freq] row, so one
        # broadcast multiply yields the full-width `emb` argument directly; the
        # stores are single unmasked lane-dense writes.
        freqs = pos_ref[...] * inv_ref[...]                 # (TS, dim)
        cos_ref[...] = jnp.cos(freqs).astype(cos_ref.dtype)
        sin_ref[...] = jnp.sin(freqs).astype(sin_ref.dtype)


def mistral_rotary_embedding(x, position_ids, *, dim, base=10000.0,
                             max_rows_per_tile=8192):
    """Returns (cos, sin) with shape [B, S, dim], dtype of x."""
    B, S = position_ids.shape
    out_dtype = x.dtype
    out_bytes = jnp.dtype(out_dtype).itemsize

    # inv_freq computed exactly as the PyTorch module does (host-side, f32).
    half = dim // 2
    inv_freq = 1.0 / (base ** (jnp.arange(0, dim, 2, dtype=jnp.float32) / dim))

    # Half-width trig only pays off when `half` fills whole vregs of lanes.
    half_trig = (half % 128 == 0)
    if half_trig:
        inv_in = inv_freq.reshape(1, half)
    else:
        inv_in = jnp.concatenate([inv_freq, inv_freq]).reshape(1, dim)
    inv_width = inv_in.shape[-1]

    # Flatten (B, S) into one row axis so tiles can span batch boundaries.
    rows = B * S
    pos_rows = position_ids.astype(jnp.float32).reshape(rows, 1)

    # Sublane alignment for the output dtype's native packing.
    if out_bytes >= 4:
        align = 8
    elif out_bytes == 2:
        align = 16
    else:
        align = 32

    # Per-row VMEM cost: 2 outputs x 2 pipeline buffers in out_dtype, plus
    # ~3 f32 intermediates (freqs + cos/sin temps) of the same width. Budget
    # against ~32 MiB so one tiling fits v5e/v6e (128 MiB) and v7x (64 MiB)
    # while still producing multi-MiB output blocks.
    vmem_budget = 32 * 1024 * 1024
    per_row_bytes = 4 * dim * out_bytes + 3 * dim * 4
    ts = min(max_rows_per_tile, max(align, vmem_budget // per_row_bytes))
    ts = max(align, (ts // align) * align)        # align down to sublane pack
    ts = min(ts, _round_up(rows, align))          # never bigger than the data

    # Pad the row count up to a multiple of ts; padded rows are sliced off
    # after the call (no single whole-sequence fallback block -> no OOM risk).
    rows_pad = _round_up(rows, ts)
    if rows_pad != rows:
        pos_rows = jnp.pad(pos_rows, ((0, rows_pad - rows), (0, 0)))
    grid = (rows_pad // ts,)

    kernel = functools.partial(_rope_kernel, half_trig=half_trig)

    cos, sin = pl.pallas_call(
        kernel,
        out_shape=(
            jax.ShapeDtypeStruct((rows_pad, dim), out_dtype),
            jax.ShapeDtypeStruct((rows_pad, dim), out_dtype),
        ),
        grid_spec=pltpu.PrefetchScalarGridSpec(
            num_scalar_prefetch=0,
            grid=grid,
            in_specs=[
                pl.BlockSpec((1, inv_width), lambda r: (0, 0)),
                pl.BlockSpec((ts, 1), lambda r: (r, 0)),
            ],
            out_specs=[
                pl.BlockSpec((ts, dim), lambda r: (r, 0)),
                pl.BlockSpec((ts, dim), lambda r: (r, 0)),
            ],
        ),
        compiler_params=pltpu.CompilerParams(
            dimension_semantics=("parallel",),
            vmem_limit_bytes=48 * 1024 * 1024,
        ),
    )(inv_in, pos_rows)

    cos = cos[:rows].reshape(B, S, dim)
    sin = sin[:rows].reshape(B, S, dim)
    return cos, sin


def _reference(x, position_ids, dim, base=10000.0):
    inv_freq = 1.0 / (base ** (jnp.arange(0, dim, 2, dtype=jnp.float32) / dim))
    freqs = jnp.einsum("k,bs->bsk", inv_freq, position_ids.astype(jnp.float32))
    emb = jnp.concatenate([freqs, freqs], axis=-1)
    return jnp.cos(emb).astype(x.dtype), jnp.sin(emb).astype(x.dtype)


if __name__ == "__main__":
    key = jax.random.PRNGKey(0)

    # --- Test 1: Mistral head_dim=128, f32 output, multi-step grid ---------
    B, S, dim = 2, 16, 128
    kx, kp = jax.random.split(key)
    x = jax.random.normal(kx, (B, S, dim), dtype=jnp.float32)
    position_ids = jnp.tile(jnp.arange(S, dtype=jnp.int32)[None, :], (B, 1))
    position_ids = position_ids + jax.random.randint(kp, (B, 1), 0, 7)

    # max_rows_per_tile=8 forces several grid steps even at this tiny size;
    # production uses the default (up to 8192-row tiles).
    cos, sin = mistral_rotary_embedding(x, position_ids, dim=dim,
                                        max_rows_per_tile=8)
    cos = jax.block_until_ready(cos)
    sin = jax.block_until_ready(sin)
    cos_ref, sin_ref = _reference(x, position_ids, dim)
    assert cos.shape == (B, S, dim) and sin.shape == (B, S, dim)
    assert cos.dtype == x.dtype and sin.dtype == x.dtype
    assert jnp.allclose(cos, cos_ref, atol=1e-5), "cos mismatch (dim=128)"
    assert jnp.allclose(sin, sin_ref, atol=1e-5), "sin mismatch (dim=128)"

    # --- Test 2: dim=256 (half-width trig path), bf16, awkward S (padding) --
    B2, S2, dim2 = 2, 13, 256
    kx2, kp2 = jax.random.split(kp)
    x2 = jax.random.normal(kx2, (B2, S2, dim2), dtype=jnp.bfloat16)
    pos2 = jnp.tile(jnp.arange(S2, dtype=jnp.int32)[None, :], (B2, 1))
    pos2 = pos2 + jax.random.randint(kp2, (B2, 1), 0, 11)

    cos2, sin2 = mistral_rotary_embedding(x2, pos2, dim=dim2)
    cos2 = jax.block_until_ready(cos2)
    sin2 = jax.block_until_ready(sin2)
    cos2_ref, sin2_ref = _reference(x2, pos2, dim2)
    assert cos2.shape == (B2, S2, dim2) and sin2.shape == (B2, S2, dim2)
    assert cos2.dtype == x2.dtype and sin2.dtype == x2.dtype
    assert jnp.allclose(cos2.astype(jnp.float32), cos2_ref.astype(jnp.float32),
                        atol=2e-2), "cos mismatch (dim=256 bf16)"
    assert jnp.allclose(sin2.astype(jnp.float32), sin2_ref.astype(jnp.float32),
                        atol=2e-2), "sin mismatch (dim=256 bf16)"

    print("KERNEL_OK")
</pallas_src>

<mosaic_0001>
module attributes {stable_mosaic.version = 11 : i64} {
  func.func @_rope_kernel(%arg0: i32, %arg1: memref<1x128xf32, #tpu.memory_space<vmem>>, %arg2: memref<8x1xf32, #tpu.memory_space<vmem>>, %arg3: memref<8x128xf32, #tpu.memory_space<vmem>>, %arg4: memref<8x128xf32, #tpu.memory_space<vmem>>) attributes {dimension_semantics = [#tpu.dimension_semantics<parallel>], iteration_bounds = array<i64: 4>, scalar_prefetch = 0 : i64, scratch_operands = 0 : i64, tpu.core_type = #tpu.core_type<tc>, window_params = [{pipeline_mode = #tpu.pipeline_mode<synchronous>, transform_indices = @transform_0, window_bounds = array<i64: 1, 128>}, {transform_indices = @transform_1, window_bounds = array<i64: 8, 1>}, {transform_indices = @transform_2, window_bounds = array<i64: 8, 128>}, {transform_indices = @transform_3, window_bounds = array<i64: 8, 128>}]} {
    %c0 = arith.constant 0 : index
    %c0_0 = arith.constant 0 : index
    %0 = vector.load %arg2[%c0, %c0_0] : memref<8x1xf32, #tpu.memory_space<vmem>>, vector<8x1xf32>
    %c0_1 = arith.constant 0 : index
    %c0_2 = arith.constant 0 : index
    %1 = vector.load %arg1[%c0_1, %c0_2] : memref<1x128xf32, #tpu.memory_space<vmem>>, vector<1x128xf32>
    %2 = vector.broadcast %0 : vector<8x1xf32> to vector<8x128xf32>
    %3 = vector.broadcast %1 : vector<1x128xf32> to vector<8x128xf32>
    %4 = arith.mulf %2, %3 : vector<8x128xf32>
    %5 = math.cos %4 : vector<8x128xf32>
    %c0_3 = arith.constant 0 : index
    %c0_4 = arith.constant 0 : index
    %6 = vector.load %arg3[%c0_3, %c0_4] : memref<8x128xf32, #tpu.memory_space<vmem>>, vector<8x128xf32>
    tpu.vector_store %arg3[%c0_3, %c0_4], %5 {strides = array<i32>} : memref<8x128xf32, #tpu.memory_space<vmem>>, vector<8x128xf32>,
    %7 = math.sin %4 : vector<8x128xf32>
    %c0_5 = arith.constant 0 : index
    %c0_6 = arith.constant 0 : index
    %8 = vector.load %arg4[%c0_5, %c0_6] : memref<8x128xf32, #tpu.memory_space<vmem>>, vector<8x128xf32>
    tpu.vector_store %arg4[%c0_5, %c0_6], %7 {strides = array<i32>} : memref<8x128xf32, #tpu.memory_space<vmem>>, vector<8x128xf32>,
    return
  }
  func.func @transform_0(%arg0: i32) -> (i32, i32) {
    %c0_i32 = arith.constant 0 : i32
    %c0_i32_0 = arith.constant 0 : i32
    %c0_i32_1 = arith.constant 0 : i32
    return %c0_i32, %c0_i32_0 : i32, i32
  }
  func.func @transform_1(%arg0: i32) -> (i32, i32) {
    %c0_i32 = arith.constant 0 : i32
    %c0_i32_0 = arith.constant 0 : i32
    return %arg0, %c0_i32 : i32, i32
  }
  func.func @transform_2(%arg0: i32) -> (i32, i32) {
    %c0_i32 = arith.constant 0 : i32
    %c0_i32_0 = arith.constant 0 : i32
    return %arg0, %c0_i32 : i32, i32
  }
  func.func @transform_3(%arg0: i32) -> (i32, i32) {
    %c0_i32 = arith.constant 0 : i32
    %c0_i32_0 = arith.constant 0 : i32
    return %arg0, %c0_i32 : i32, i32
  }
}

</mosaic_0001>

<llo_original>
// kernel: tpu_custom_call.1
$region0: #{tpu_custom_call.1}
  #allocation0 [shape = 'u32[]', space=smem, size = 0x4, offset = 0x4, fixed_abs, tag = 'smem constant byte address 0x4 - core index']
  #allocation1 [shape = 'u32[144,128]{1,0:T(1,128)}', space=vmem, size = 0x12000, scoped, tag = 'internal scratch']
  %s0 = inlined_call_operand.vmem [shape: f32[1,128], index: 0, kind: input, shape index: {}]
  %s1 = inlined_call_operand.vmem [shape: f32[32,1], index: 1, kind: input, shape index: {}]
  %s2 = inlined_call_operand.hbm [shape: f32[32,128], index: 2, kind: output, shape index: {0}]
  %s3 = inlined_call_operand.hbm [shape: f32[32,128], index: 3, kind: output, shape index: {1}]
  %4 = xla_tuple %s2, %s3
  %s5 = sld [smem:[#allocation0]]
  $region49: #{tpu_custom_call.1} parent=0
    _
  %s7 = ssub.s32 1, %s5
  %s8 = scalar_select 0, %s7, %s5
  $region1: #{tpu_custom_call.1} parent=0
    #allocation2 [shape = 'u8[8192]{0}', space=vmem, size = 0x2000, scoped, tag = 'output window, operand 0']
    #allocation3 [shape = 's32[2]{0}', space=sflag, size = 0x8, scoped, tag = 'scoped memory for tpu_custom_call.1']
    #allocation4 [shape = 'u8[8192]{0}', space=vmem, size = 0x2000, scoped, tag = 'output window, operand 1']
    #allocation5 [shape = 's32[2]{0}', space=sflag, size = 0x8, scoped, tag = 'scoped memory for tpu_custom_call.1']
    %9 = vsyncpa [#allocation3], 0
    %s10 = scalar_lea.sflag [#allocation3], 1
    %11 = vsyncpa %s10, 0
    %12 = vsyncpa [#allocation5], 0
    %s13 = scalar_lea.sflag [#allocation5], 1
    %14 = vsyncpa %s13, 0
    loop: start=0, step=1, limit=6
    $region2: #{tpu_custom_call.1} parent=1 // loop_pre_header
      _
    $region3: #{tpu_custom_call.1} parent=1 // loop_header
      %s16 = sphi 0, %s20
      %p17 = scmp.ge.s32.totalorder %s16, 6
      %s24 = sphi 0, %s24
      %s26 = sphi 0, %s24
      %s27 = sphi 0, %s26
      %s41 = sphi 0, %s27
      %s47 = sphi 0, %s49
      %s50 = sphi 0, %s47
      %s51 = sphi 0, %s50
      %s67 = sphi 0, %s51
      %s73 = sphi 0, %s75
      %s76 = sphi 0, %s73
      %s77 = sphi 0, %s76
      %s93 = sphi 0, %s77
      %s99 = sphi 0, %s101
      %s102 = sphi 0, %s99
      %s103 = sphi 0, %s102
      %s119 = sphi 0, %s103
    $region4: #{tpu_custom_call.1} parent=1 // loop_header_branch
      %19 = sbr.rel (%p17) target = $region8
    $region5: #{tpu_custom_call.1} parent=1 // loop_body
      %s21 = ssub.s32 %s16, 1
      %s22 = ssub.s32 %s16, 2
      %s23 = sadd.s32 %s16, 1
      %s25 = sadd.s32 %s24, 1
      %p28 = scmp.eq.s32.totalorder %s16, 3
      %p29 = scmp.ne.s32.totalorder %s24, %s26
      %p30 = scmp.eq.s32.totalorder %s16, 0
      %p31 = por %p29, %p30
      %p32 = scmp.ne.s32.totalorder %s24, %s26
      %p33 = scmp.eq.s32.totalorder %s21, 3
      %p34 = por %p32, %p33
      %p35 = scmp.ne.s32.totalorder %s26, %s27
      %p36 = scmp.eq.s32.totalorder %s21, 0
      %p37 = por %p35, %p36
      %p38 = scmp.ne.s32.totalorder %s26, %s27
      %p39 = scmp.eq.s32.totalorder %s22, 3
      %p40 = por %p38, %p39
      %p42 = scmp.ne.s32.totalorder %s27, %s41
      %p43 = scmp.eq.s32.totalorder %s22, 0
      %p44 = por %p42, %p43
      %s45 = ssub.s32 %s16, %s23
      %p46 = scmp.eq.s32.totalorder %s45, 0
      %s48 = sadd.s32 %s47, 1
      %s49 = scalar_select %p46, %s47, %s48
      %p52 = pneg %p46
      %p53 = scmp.eq.s32.totalorder %s16, 3
      %p54 = por %p52, %p53
      %p55 = scmp.ne.s32.totalorder %s47, %s50
      %p56 = scmp.eq.s32.totalorder %s16, 0
      %p57 = por %p55, %p56
      %p58 = scmp.ne.s32.totalorder %s47, %s50
      %p59 = scmp.eq.s32.totalorder %s21, 3
      %p60 = por %p58, %p59
      %p61 = scmp.ne.s32.totalorder %s50, %s51
      %p62 = scmp.eq.s32.totalorder %s21, 0
      %p63 = por %p61, %p62
      %p64 = scmp.ne.s32.totalorder %s50, %s51
      %p65 = scmp.eq.s32.totalorder %s22, 3
      %p66 = por %p64, %p65
      %p68 = scmp.ne.s32.totalorder %s51, %s67
      %p69 = scmp.eq.s32.totalorder %s22, 0
      %p70 = por %p68, %p69
      %s71 = ssub.s32 %s16, %s23
      %p72 = scmp.eq.s32.totalorder %s71, 0
      %s74 = sadd.s32 %s73, 1
      %s75 = scalar_select %p72, %s73, %s74
      %p78 = pneg %p72
      %p79 = scmp.eq.s32.totalorder %s16, 3
      %p80 = por %p78, %p79
      %p81 = scmp.ne.s32.totalorder %s73, %s76
      %p82 = scmp.eq.s32.totalorder %s16, 0
      %p83 = por %p81, %p82
      %p84 = scmp.ne.s32.totalorder %s73, %s76
      %p85 = scmp.eq.s32.totalorder %s21, 3
      %p86 = por %p84, %p85
      %p87 = scmp.ne.s32.totalorder %s76, %s77
      %p88 = scmp.eq.s32.totalorder %s21, 0
      %p89 = por %p87, %p88
      %p90 = scmp.ne.s32.totalorder %s76, %s77
      %p91 = scmp.eq.s32.totalorder %s22, 3
      %p92 = por %p90, %p91
      %p94 = scmp.ne.s32.totalorder %s77, %s93
      %p95 = scmp.eq.s32.totalorder %s22, 0
      %p96 = por %p94, %p95
      %s97 = ssub.s32 %s16, %s23
      %p98 = scmp.eq.s32.totalorder %s97, 0
      %s100 = sadd.s32 %s99, 1
      %s101 = scalar_select %p98, %s99, %s100
      %p104 = pneg %p98
      %p105 = scmp.eq.s32.totalorder %s16, 3
      %p106 = por %p104, %p105
      %p107 = scmp.ne.s32.totalorder %s99, %s102
      %p108 = scmp.eq.s32.totalorder %s16, 0
      %p109 = por %p107, %p108
      %p110 = scmp.ne.s32.totalorder %s99, %s102
      %p111 = scmp.eq.s32.totalorder %s21, 3
      %p112 = por %p110, %p111
      %p113 = scmp.ne.s32.totalorder %s102, %s103
      %p114 = scmp.eq.s32.totalorder %s21, 0
      %p115 = por %p113, %p114
      %p116 = scmp.ne.s32.totalorder %s102, %s103
      %p117 = scmp.eq.s32.totalorder %s22, 3
      %p118 = por %p116, %p117
      %p120 = scmp.ne.s32.totalorder %s103, %s119
      %p121 = scmp.eq.s32.totalorder %s22, 0
      %p122 = por %p120, %p121
      %p123 = scmp.le.s32.totalorder 1, %s16
      %p124 = scmp.lt.s32.totalorder %s16, 5
      %p125 = pnand %p123, %p124
      %p126 = pneg %p125
      // Predicated region
      $region9: #{tpu_custom_call.1} parent=5 // pred_check
        _
      $region10: #{tpu_custom_call.1} parent=5 // pred_check_branch
        %128 = sbr.rel (%p125) target = $region12
      $region11: #{tpu_custom_call.1} parent=5 // pred_region
        %s129 = ssub.s32 %s16, 1
        // Predicated region
        $region13: #{tpu_custom_call.1} parent=11 // pred_check
          %p130 = pneg %p37
        $region14: #{tpu_custom_call.1} parent=11 // pred_check_branch
          %132 = sbr.rel (%p130) target = $region16
        $region15: #{tpu_custom_call.1} parent=11 // pred_region
          _
        $region16: #{tpu_custom_call.1} parent=11 // pred_fallthru
          _
      $region12: #{tpu_custom_call.1} parent=5 // pred_fallthru
        _
      %p133 = scmp.lt.s32.totalorder %s16, 4
      // Predicated region
      $region17: #{tpu_custom_call.1} parent=5 // pred_check
        %p134 = pneg %p133
      $region18: #{tpu_custom_call.1} parent=5 // pred_check_branch
        %136 = sbr.rel (%p134) target = $region20
      $region19: #{tpu_custom_call.1} parent=5 // pred_region
        // Predicated region
        $region21: #{tpu_custom_call.1} parent=19 // pred_check
          %p137 = pneg %p57
        $region22: #{tpu_custom_call.1} parent=19 // pred_check_branch
          %139 = sbr.rel (%p137) target = $region24
        $region23: #{tpu_custom_call.1} parent=19 // pred_region
          %p140 = scmp.lt.s32.totalorder %s16, 3
          %s141 = scalar_select %p140, %s16, 3
          %s142 = smul.addr %s141, 8
          %s143 = scalar_lea.vmem %s1, %s142
        $region24: #{tpu_custom_call.1} parent=19 // pred_fallthru
          _
      $region20: #{tpu_custom_call.1} parent=5 // pred_fallthru
        _
      %p144 = scmp.le.s32.totalorder 1, %s16
      %p145 = scmp.lt.s32.totalorder %s16, 5
      %p146 = pnand %p144, %p145
      %p147 = pneg %p146
      // Predicated region
      $region25: #{tpu_custom_call.1} parent=5 // pred_check
        _
      $region26: #{tpu_custom_call.1} parent=5 // pred_check_branch
        %149 = sbr.rel (%p146) target = $region28
      $region27: #{tpu_custom_call.1} parent=5 // pred_region
        %s150 = ssub.s32 %s16, 1
        %p151 = pneg %p37
        %p152 = pneg %p34
        %p153 = scmp.lt.s32.totalorder %s21, 3
        %s154 = scalar_select %p153, %s21, 3
        %s155 = smul.addr %s154, 8
        %s156 = scalar_lea.vmem %s1, %s155
        %p157 = pneg %p63
        %p158 = pneg %p60
        %p159 = pneg %p89
        %p160 = pneg %p86
        %s161 = sand.u32 %s76, 1
        %s162 = scalar_lea.sflag [#allocation3], %s161
        %s163 = sand.u32 %s76, 1
        %s164 = smul.addr %s163, 8
        %s165 = scalar_lea.vmem [#allocation2], %s164
        %p166 = pneg %p115
        %p167 = pneg %p112
        %s168 = sand.u32 %s102, 1
        %s169 = scalar_lea.sflag [#allocation5], %s168
        %s170 = sand.u32 %s102, 1
        %s171 = smul.addr %s170, 8
        %s172 = scalar_lea.vmem [#allocation4], %s171
        %p173 = scmp.lt.s32.totalorder %s21, 3
        %s174 = scalar_select %p173, %s21, 3
        %s175 = smul.addr %s174, 8
        %s176 = scalar_lea.vmem %s1, %s175
        %v177 = vld [vmem:[%s176] sm:$0xff]
        %v178 = vld [vmem:[%s0] sm:$0x1]
        %180 = vset.pattern.permute.xlu0 0
        %181 = vperm.xlu0 %180, %v177
        %v182 = vpop.permute.xlu0 %181
        %v185 = vlaneseq
        %v186 = vshrl.u32 %v185, 7
        %v187 = vsub.s32 0, %v186
        %v188 = vrot.slane %v178, %v187
        %v190 = vmul.f32 %v182, %v188
        %v191 = vand.u32 2147483647, %v190
        %vm192 = vcmp.le.f32.partialorder %v191, 0.7853982
        %vm193 = vcmp.lt.s32.totalorder %v190, 0
        %v194 = vand.u32 %v190, 2139095040
        %v195 = vshrl.u32 %v194, 23
        %v196 = vsub.s32 %v195, 127
        %v197 = vand.u32 2147483647, %v190
        %v198 = vand.u32 %v197, 8388607
        %v199 = vor.u32 %v198, 8388608
        %v200 = vsub.s32 0, %v199
        %v201 = vadd.s32 %v196, 1
        %vm202 = vcmp.gt.s32.totalorder %v201, 0
        %v203 = vsel %vm202, %v201, 0
        %v204 = vshrl.u32 %v203, 5
        %v205 = vand.u32 %v203, 31
        %v206 = vsub.s32 32, %v205
        %v207 = vshrl.u32 683565275, %v206
        %v208 = vshll.u32 683565275, %v205
        %v209 = vshrl.u32 2475754826, %v206
        %v210 = vor.u32 %v208, %v209
        %v211 = vshll.u32 2475754826, %v205
        %v212 = vshrl.u32 2131351028, %v206
        %v213 = vor.u32 %v211, %v212
        %v214 = vshll.u32 2131351028, %v205
        %v215 = vshrl.u32 2102212464, %v206
        %v216 = vor.u32 %v214, %v215
        %v217 = vshll.u32 2102212464, %v205
        %v218 = vshrl.u32 920167782, %v206
        %v219 = vor.u32 %v217, %v218
        %v220 = vshll.u32 920167782, %v205
        %v221 = vshrl.u32 1326507024, %v206
        %v222 = vor.u32 %v220, %v221
        %vm223 = vcmp.lt.s32.totalorder %v204, 1
        %vm224 = vcmp.lt.s32.totalorder %v204, 2
        %vm225 = vcmp.lt.s32.totalorder %v204, 3
        %vm226 = vcmp.lt.s32.totalorder %v204, 4
        %v227 = vsel %vm223, %v207, %v210
        %v228 = vsel %vm226, %v216, 2102212464
        %v229 = vsel %vm225, %v213, %v228
        %v230 = vsel %vm224, %v227, %v229
        %v231 = vsel %vm223, %v210, %v213
        %v232 = vsel %vm226, %v219, 920167782
        %v233 = vsel %vm225, %v216, %v232
        %v234 = vsel %vm224, %v231, %v233
        %v235 = vsel %vm223, %v213, %v216
        %v236 = vsel %vm226, %v222, 1326507024
        %v237 = vsel %vm225, %v219, %v236
        %v238 = vsel %vm224, %v235, %v237
        %v239 = vshll.u32 %v199, 8
        %v240 = vmul.u32.u64.compose %v239, %v238
        %v241 = vextract.low.u32 %v240
        %v242 = vextract.high.u32 %v240
        %v243 = vmul.u32.u64.compose %v239, %v234
        %v244 = vextract.low.u32 %v243
        %v245 = vextract.high.u32 %v243
        %v246 = vmul.u32 %v239, %v230
        %v247 = vadd.s32 %v242, %v244
        %vm248 = vc.u32 %v242, %v244
        %v249 = vadd.s32 %v245, 1
        %v250 = vsel %vm248, %v249, %v245
        %v251 = vadd.s32 %v246, %v250
        %v252 = vadd.s32 %v251, 536870912
        %v253 = vshrl.u32 %v252, 30
        %v254 = vshll.u32 %v253, 30
        %v255 = vsub.s32 %v251, %v254
        %vm256 = vcmp.lt.s32.totalorder %v255, 0
        %v257 = vsub.s32 0, %v255
        %v258 = vsel %vm256, %v257, %v255
        %v259 = vclz %v258
        %v260 = vsub.s32 %v259, 2
        %vm261 = vcmp.gt.s32.totalorder 0, %v260
        %v262 = vsel %vm261, 0, %v260
        %v263 = vsub.s32 32, %v262
        %v264 = vshll.u32 %v255, %v262
        %v265 = vshrl.u32 %v247, %v263
        %v266 = vor.u32 %v264, %v265
        %v267 = vsub.s32 4294967266, %v262
        %v268 = vadd.s32 %v267, 127
        %v269 = vshll.u32 %v268, 23
        %v270 = vor.u32 4788187, %v269
        %v271 = vand.u32 2147483647, %v270
        %v273 = vcvt.s32.f32 %v266
        %v274 = vmul.f32 %v273, %v271
        %v275 = vxor.u32 %v274, 2147483648
        %v276 = vsel %vm193, %v275, %v274
        %v277 = vsub.s32 4, %v253
        %v278 = vsel %vm193, %v277, %v253
        %v279 = vsel %vm192, %v190, %v276
        %v280 = vsel %vm192, 0, %v278
        %v281 = vcosq.f32.pop %v279
        %v282 = vsinq.f32.pop %v279
        %vm283 = vweird.f32 %v190
        %v284 = vand.u32 %v280, 3
        %vm285 = vcmp.lt.s32.totalorder %v284, 2
        %vm286 = vcmp.eq.s32.totalorder %v284, 0
        %v287 = vxor.u32 %v282, 2147483648
        %v288 = vsel %vm286, %v281, %v287
        %vm289 = vcmp.eq.s32.totalorder %v284, 2
        %v290 = vxor.u32 %v281, 2147483648
        %v291 = vsel %vm289, %v290, %v282
        %v292 = vsel %vm285, %v288, %v291
        %v293 = vsel %vm283, nan, %v292
        %294 = vst [vmem:[%s165] sm:$0xff] %v293
        %v295 = vand.u32 2147483647, %v190
        %vm296 = vcmp.le.f32.partialorder %v295, 0.7853982
        %vm297 = vcmp.lt.s32.totalorder %v190, 0
        %v298 = vand.u32 %v190, 2139095040
        %v299 = vshrl.u32 %v298, 23
        %v300 = vsub.s32 %v299, 127
        %v301 = vand.u32 2147483647, %v190
        %v302 = vand.u32 %v301, 8388607
        %v303 = vor.u32 %v302, 8388608
        %v304 = vsub.s32 0, %v303
        %v305 = vadd.s32 %v300, 1
        %vm306 = vcmp.gt.s32.totalorder %v305, 0
        %v307 = vsel %vm306, %v305, 0
        %v308 = vshrl.u32 %v307, 5
        %v309 = vand.u32 %v307, 31
        %v310 = vsub.s32 32, %v309
        %v311 = vshrl.u32 683565275, %v310
        %v312 = vshll.u32 683565275, %v309
        %v313 = vshrl.u32 2475754826, %v310
        %v314 = vor.u32 %v312, %v313
        %v315 = vshll.u32 2475754826, %v309
        %v316 = vshrl.u32 2131351028, %v310
        %v317 = vor.u32 %v315, %v316
        %v318 = vshll.u32 2131351028, %v309
        %v319 = vshrl.u32 2102212464, %v310
        %v320 = vor.u32 %v318, %v319
        %v321 = vshll.u32 2102212464, %v309
        %v322 = vshrl.u32 920167782, %v310
        %v323 = vor.u32 %v321, %v322
        %v324 = vshll.u32 920167782, %v309
        %v325 = vshrl.u32 1326507024, %v310
        %v326 = vor.u32 %v324, %v325
        %vm327 = vcmp.lt.s32.totalorder %v308, 1
        %vm328 = vcmp.lt.s32.totalorder %v308, 2
        %vm329 = vcmp.lt.s32.totalorder %v308, 3
        %vm330 = vcmp.lt.s32.totalorder %v308, 4
        %v331 = vsel %vm327, %v311, %v314
        %v332 = vsel %vm330, %v320, 2102212464
        %v333 = vsel %vm329, %v317, %v332
        %v334 = vsel %vm328, %v331, %v333
        %v335 = vsel %vm327, %v314, %v317
        %v336 = vsel %vm330, %v323, 920167782
        %v337 = vsel %vm329, %v320, %v336
        %v338 = vsel %vm328, %v335, %v337
        %v339 = vsel %vm327, %v317, %v320
        %v340 = vsel %vm330, %v326, 1326507024
        %v341 = vsel %vm329, %v323, %v340
        %v342 = vsel %vm328, %v339, %v341
        %v343 = vshll.u32 %v303, 8
        %v344 = vmul.u32.u64.compose %v343, %v342
        %v345 = vextract.low.u32 %v344
        %v346 = vextract.high.u32 %v344
        %v347 = vmul.u32.u64.compose %v343, %v338
        %v348 = vextract.low.u32 %v347
        %v349 = vextract.high.u32 %v347
        %v350 = vmul.u32 %v343, %v334
        %v351 = vadd.s32 %v346, %v348
        %vm352 = vc.u32 %v346, %v348
        %v353 = vadd.s32 %v349, 1
        %v354 = vsel %vm352, %v353, %v349
        %v355 = vadd.s32 %v350, %v354
        %v356 = vadd.s32 %v355, 536870912
        %v357 = vshrl.u32 %v356, 30
        %v358 = vshll.u32 %v357, 30
        %v359 = vsub.s32 %v355, %v358
        %vm360 = vcmp.lt.s32.totalorder %v359, 0
        %v361 = vsub.s32 0, %v359
        %v362 = vsel %vm360, %v361, %v359
        %v363 = vclz %v362
        %v364 = vsub.s32 %v363, 2
        %vm365 = vcmp.gt.s32.totalorder 0, %v364
        %v366 = vsel %vm365, 0, %v364
        %v367 = vsub.s32 32, %v366
        %v368 = vshll.u32 %v359, %v366
        %v369 = vshrl.u32 %v351, %v367
        %v370 = vor.u32 %v368, %v369
        %v371 = vsub.s32 4294967266, %v366
        %v372 = vadd.s32 %v371, 127
        %v373 = vshll.u32 %v372, 23
        %v374 = vor.u32 4788187, %v373
        %v375 = vand.u32 2147483647, %v374
        %v377 = vcvt.s32.f32 %v370
        %v378 = vmul.f32 %v377, %v375
        %v379 = vxor.u32 %v378, 2147483648
        %v380 = vsel %vm297, %v379, %v378
        %v381 = vsub.s32 4, %v357
        %v382 = vsel %vm297, %v381, %v357
        %v383 = vsel %vm296, %v190, %v380
        %v384 = vsel %vm296, 0, %v382
        %v385 = vcosq.f32.pop %v383
        %v386 = vsinq.f32.pop %v383
        %vm387 = vweird.f32 %v190
        %v388 = vadd.s32 %v384, 3
        %v389 = vand.u32 %v388, 3
        %vm390 = vcmp.lt.s32.totalorder %v389, 2
        %vm391 = vcmp.eq.s32.totalorder %v389, 0
        %v392 = vxor.u32 %v386, 2147483648
        %v393 = vsel %vm391, %v385, %v392
        %vm394 = vcmp.eq.s32.totalorder %v389, 2
        %v395 = vxor.u32 %v385, 2147483648
        %v396 = vsel %vm394, %v395, %v386
        %v397 = vsel %vm390, %v393, %v396
        %v398 = vsel %vm387, nan, %v397
        %399 = vst [vmem:[%s172] sm:$0xff] %v398
        %s400 = sand.u32 %s76, 1
        %s401 = scalar_lea.sflag [#allocation3], %s400
        %s402 = sand.u32 %s76, 1
        %s403 = smul.addr %s402, 8
        %s404 = scalar_lea.vmem [#allocation2], %s403
        %s405 = sand.u32 %s102, 1
        %s406 = scalar_lea.sflag [#allocation5], %s405
        %s407 = sand.u32 %s102, 1
        %s408 = smul.addr %s407, 8
        %s409 = scalar_lea.vmem [#allocation4], %s408
        // Predicated region
        $region29: #{tpu_custom_call.1} parent=27 // pred_check
          %p410 = pneg %p86
        $region30: #{tpu_custom_call.1} parent=27 // pred_check_branch
          %412 = sbr.rel (%p410) target = $region32
        $region31: #{tpu_custom_call.1} parent=27 // pred_region
          %s414 = ssub.s32 128, 128
          %415 = vsyncadd %s401, %s414
          %s416 = smul.addr %s21, 128
          %s417 = scalar_lea.hbm %s2, %s416
          %s419 = sshll.u32 %s404, 4
          %s420 = int_to_ptr.vmem [resolvable:$true] %s419
          %422 = dma.vmem_to_hbm [thread:$0]  %s420, 128, %s417, %s401
        $region32: #{tpu_custom_call.1} parent=27 // pred_fallthru
          _
        // Predicated region
        $region33: #{tpu_custom_call.1} parent=27 // pred_check
          %p423 = pneg %p112
        $region34: #{tpu_custom_call.1} parent=27 // pred_check_branch
          %425 = sbr.rel (%p423) target = $region36
        $region35: #{tpu_custom_call.1} parent=27 // pred_region
          %s427 = ssub.s32 128, 128
          %428 = vsyncadd %s406, %s427
          %s429 = smul.addr %s21, 128
          %s430 = scalar_lea.hbm %s3, %s429
          %s432 = sshll.u32 %s409, 4
          %s433 = int_to_ptr.vmem [resolvable:$true] %s432
          %435 = dma.vmem_to_hbm [thread:$0]  %s433, 128, %s430, %s406
        $region36: #{tpu_custom_call.1} parent=27 // pred_fallthru
          _
      $region28: #{tpu_custom_call.1} parent=5 // pred_fallthru
        _
      %p436 = scmp.le.s32.totalorder 2, %s16
      // Predicated region
      $region37: #{tpu_custom_call.1} parent=5 // pred_check
        %p437 = pneg %p436
      $region38: #{tpu_custom_call.1} parent=5 // pred_check_branch
        %439 = sbr.rel (%p437) target = $region40
      $region39: #{tpu_custom_call.1} parent=5 // pred_region
        %s440 = ssub.s32 %s16, 2
        // Predicated region
        $region41: #{tpu_custom_call.1} parent=39 // pred_check
          %p441 = pneg %p92
        $region42: #{tpu_custom_call.1} parent=39 // pred_check_branch
          %443 = sbr.rel (%p441) target = $region44
        $region43: #{tpu_custom_call.1} parent=39 // pred_region
          %s444 = sand.u32 %s77, 1
          %s445 = scalar_lea.sflag [#allocation3], %s444
          %s446 = sand.u32 %s77, 1
          %s447 = smul.addr %s446, 8
          %s448 = scalar_lea.vmem [#allocation2], %s447
          %449 = dma.done %s445, 128
        $region44: #{tpu_custom_call.1} parent=39 // pred_fallthru
          _
        // Predicated region
        $region45: #{tpu_custom_call.1} parent=39 // pred_check
          %p450 = pneg %p118
        $region46: #{tpu_custom_call.1} parent=39 // pred_check_branch
          %452 = sbr.rel (%p450) target = $region48
        $region47: #{tpu_custom_call.1} parent=39 // pred_region
          %s453 = sand.u32 %s103, 1
          %s454 = scalar_lea.sflag [#allocation5], %s453
          %s455 = sand.u32 %s103, 1
          %s456 = smul.addr %s455, 8
          %s457 = scalar_lea.vmem [#allocation4], %s456
          %458 = dma.done %s454, 128
        $region48: #{tpu_custom_call.1} parent=39 // pred_fallthru
          _
      $region40: #{tpu_custom_call.1} parent=5 // pred_fallthru
        _
    $region6: #{tpu_custom_call.1} parent=1 // loop_footer
      %s20 = sadd.s32 1, %s16
    $region7: #{tpu_custom_call.1} parent=1 // loop_footer_branch
      %15 = sbr.rel target = $region3
    $region8: #{tpu_custom_call.1} parent=1 // loop_exit
      _
    %459 = vsyncpa [#allocation3], 1
    %s460 = scalar_lea.sflag [#allocation3], 1
    %461 = vsyncpa %s460, 1
    %462 = vsyncpa [#allocation5], 1
    %s463 = scalar_lea.sflag [#allocation5], 1
    %464 = vsyncpa %s463, 1

</llo_original>
